<compile_context>
chip_gen: v5e
topology: v5e:2x2
jax: 0.10.0
libtpu: 0.0.40
codegen_flags: <defaults>
</compile_context>

<pallas_src>
import functools

import jax
import jax.numpy as jnp
from jax import lax
from jax.experimental import pallas as pl
from jax.experimental.pallas import tpu as pltpu

IGNORE_INDEX = 255
CLASS_WEIGHT = [0.5, 1.0, 1.5, 2.0]   # cfg.WEIGHT (static per-class weights)

_LANES = 128
_MAX_TILE_ROWS = 1024                 # 1024 * 128 = 131072 pixels per tile
_INPUT_VMEM_BUDGET = 8 << 20          # double-buffered input tiles budget


def _ce_kernel(x_ref, y_ref, loss_ref, wsum_ref, *, rows, tile_rows,
               num_classes, class_weights, need_row_mask):
    """Weighted CE partial sums for one (image, pixel-tile) grid step.

    x_ref:    (C, tile_rows, 128) logits tile (native dtype, upcast here).
    y_ref:    (tile_rows, 128) integer targets tile (native dtype).
    loss_ref: (1, 1) partial sum of w[y]*(lse - logit[y]).
    wsum_ref: (1, 1) partial sum of w[y].
    """
    y = y_ref[...].astype(jnp.int32)

    # Pass 1: running max over the class axis. Classes are separate (S, 128)
    # slabs, so this is pure element-wise VPU work (no cross-lane/sublane XLU).
    m = x_ref[0, :, :].astype(jnp.float32)
    for c in range(1, num_classes):
        m = jnp.maximum(m, x_ref[c, :, :].astype(jnp.float32))

    # Pass 2: exp-sum plus logit[y] / weight[y] via an unrolled select chain.
    # Rows are re-read from VMEM so live data stays O(tile), not O(C * tile).
    s = jnp.zeros_like(m)
    picked = jnp.zeros_like(m)
    pix_w = jnp.zeros_like(m)
    for c in range(num_classes):
        xc = x_ref[c, :, :].astype(jnp.float32)
        s = s + jnp.exp(xc - m)
        sel = (y == c)
        picked = jnp.where(sel, xc, picked)
        pix_w = jnp.where(sel, jnp.float32(class_weights[c]), pix_w)
    # Ignored pixels (y == ignore_index) match no class -> pix_w == 0 and
    # picked == 0, so their contribution is exactly 0; no explicit ignore mask.

    per_px = pix_w * (m + jnp.log(s) - picked)

    if need_row_mask:
        # The last pixel tile of an image may run past `rows`; garbage logits
        # can be NaN/inf, so mask the *product* (0 * NaN == NaN otherwise).
        ti = pl.program_id(1)
        row = ti * tile_rows + lax.broadcasted_iota(jnp.int32, per_px.shape, 0)
        valid = row < rows
        per_px = jnp.where(valid, per_px, 0.0)
        pix_w = jnp.where(valid, pix_w, 0.0)

    # One cross-lane/sublane reduce per tile (XLU slot; output is 8 bytes).
    loss_ref[...] = jnp.sum(per_px).reshape(1, 1)
    wsum_ref[...] = jnp.sum(pix_w).reshape(1, 1)


def _jax_ce_partial(x_flat, y_flat, cw, ignore_index):
    """Plain-JAX weighted-CE partial sums for a small pixel remainder.

    x_flat: (N, C, P) float; y_flat: (N, P) int. Returns (loss_sum, w_sum).
    """
    x = x_flat.astype(jnp.float32)
    y = y_flat.astype(jnp.int32)
    c = x.shape[1]
    lse = jax.nn.logsumexp(x, axis=1)                              # (N, P)
    yc = jnp.clip(y, 0, c - 1)
    picked = jnp.take_along_axis(x, yc[:, None, :], axis=1)[:, 0, :]
    valid = (y != ignore_index).astype(jnp.float32)
    w = jnp.asarray(cw, jnp.float32)[yc] * valid
    return jnp.sum(w * (lse - picked)), jnp.sum(w)


def cross_entropy_loss(logits, y, weight=None, ignore_index=IGNORE_INDEX,
                       tile_rows=None):
    """logits: (N, C, H, W) float (f32 or bf16); y: (N, H, W) int.

    `weight` must be concrete per-class floats (cfg.WEIGHT) or None; it is
    baked into the kernel as static constants.
    """
    N, C, H, W = logits.shape
    hw = H * W

    if weight is None:
        cw = (1.0,) * C
    else:
        cw = tuple(float(v) for v in weight)   # requires concrete weights

    x_flat = logits.reshape(N, C, hw)          # free reshape (row-major)
    y_flat = y.reshape(N, hw)

    rows = hw // _LANES
    hw_main = rows * _LANES

    loss_sum = jnp.float32(0.0)
    w_sum = jnp.float32(0.0)

    if hw_main < hw:
        # < 128 pixels / image remainder: tiny plain-JAX path.
        # TODO(synk): when hw % 128 != 0 the body slice below materializes a
        # copy of the logits; pad hw to a multiple of 128 upstream to avoid it.
        ls, ws = _jax_ce_partial(x_flat[:, :, hw_main:], y_flat[:, hw_main:],
                                 cw, ignore_index)
        loss_sum = loss_sum + ls
        w_sum = w_sum + ws

    if rows > 0:
        xb = x_flat[:, :, :hw_main] if hw_main < hw else x_flat
        yb = y_flat[:, :hw_main] if hw_main < hw else y_flat
        # Sublane-dense pixel layout: (rows, 128); free row-major reshape.
        xb = xb.reshape(N, C, rows, _LANES)
        yb = yb.reshape(N, rows, _LANES)

        x_bytes = jnp.dtype(logits.dtype).itemsize
        y_bytes = jnp.dtype(y.dtype).itemsize
        per_row = _LANES * (C * x_bytes + y_bytes)   # bytes per 128-px row

        if tile_rows is None:
            cap = max(8, _INPUT_VMEM_BUDGET // (2 * per_row))
            cap = min(cap, _MAX_TILE_ROWS)
            if rows <= cap:
                tile_rows = rows               # whole image per step, grid=(N,1)
            else:
                tile_rows = max(32, (cap // 32) * 32)   # 32: sub-32-bit safe
        tile_rows = min(int(tile_rows), rows)
        if tile_rows < rows and tile_rows % 8 != 0:
            tile_rows = min(((tile_rows + 7) // 8) * 8, rows)
        num_t = pl.cdiv(rows, tile_rows)
        need_row_mask = (rows % tile_rows) != 0

        # Double-buffered input tiles + ~8 f32 tile-sized VMEM temporaries.
        vmem_need = 2 * tile_rows * per_row + 8 * tile_rows * _LANES * 4
        vmem_limit = int(min(max(vmem_need + (1 << 20), 32 << 20), 48 << 20))

        kernel = functools.partial(
            _ce_kernel, rows=rows, tile_rows=tile_rows, num_classes=C,
            class_weights=cw, need_row_mask=need_row_mask)

        cost = pl.CostEstimate(
            flops=6 * N * C * hw,
            transcendentals=N * (C + 1) * hw,
            bytes_accessed=N * C * hw * x_bytes + N * hw * y_bytes + 8 * N)

        loss_parts, wsum_parts = pl.pallas_call(
            kernel,
            out_shape=(jax.ShapeDtypeStruct((N, num_t, 1, 1), jnp.float32),
                       jax.ShapeDtypeStruct((N, num_t, 1, 1), jnp.float32)),
            grid_spec=pltpu.PrefetchScalarGridSpec(
                num_scalar_prefetch=0,
                grid=(N, num_t),
                in_specs=[
                    pl.BlockSpec((None, C, tile_rows, _LANES),
                                 lambda n, ti: (n, 0, ti, 0)),
                    pl.BlockSpec((None, tile_rows, _LANES),
                                 lambda n, ti: (n, ti, 0)),
                ],
                out_specs=[
                    pl.BlockSpec((None, None, 1, 1),
                                 lambda n, ti: (n, ti, 0, 0)),
                    pl.BlockSpec((None, None, 1, 1),
                                 lambda n, ti: (n, ti, 0, 0)),
                ],
            ),
            compiler_params=pltpu.CompilerParams(
                dimension_semantics=("parallel", "parallel"),
                vmem_limit_bytes=vmem_limit),
            cost_estimate=cost,
        )(xb, yb)

        loss_sum = loss_sum + jnp.sum(loss_parts)
        w_sum = w_sum + jnp.sum(wsum_parts)

    # 'mean' reduction over weights; all-ignored batch -> NaN like PyTorch.
    return loss_sum / w_sum


def _reference_ce(logits, y, weight, ignore_index=IGNORE_INDEX):
    N, C, H, W = logits.shape
    x = jnp.transpose(logits, (0, 2, 3, 1)).reshape(-1, C).astype(jnp.float32)
    t = y.reshape(-1).astype(jnp.int32)
    lse = jax.nn.logsumexp(x, axis=-1)
    picked = jnp.take_along_axis(
        x, jnp.clip(t, 0, C - 1)[:, None], axis=-1)[:, 0]
    valid = (t != ignore_index).astype(jnp.float32)
    w = jnp.asarray(weight, jnp.float32)
    pw = w[jnp.clip(t, 0, C - 1)] * valid
    return jnp.sum(pw * (lse - picked)) / jnp.sum(pw)


if __name__ == "__main__":
    key = jax.random.PRNGKey(0)

    # Test 1: whole-image tile (grid=(N,1)), hw % 128 == 0, no row mask.
    k1, k2 = jax.random.split(key)
    N, C, H, W = 2, 4, 16, 16
    logits = jax.random.normal(k1, (N, C, H, W), dtype=jnp.float32)
    y = jax.random.randint(k2, (N, H, W), 0, C, dtype=jnp.int32)
    y = y.at[:, :2, :].set(IGNORE_INDEX)          # exercise ignore_index
    loss = jax.block_until_ready(
        cross_entropy_loss(logits, y, CLASS_WEIGHT, IGNORE_INDEX))
    ref = jax.block_until_ready(
        _reference_ce(logits, y, CLASS_WEIGHT, IGNORE_INDEX))
    assert jnp.allclose(loss, ref, rtol=1e-5, atol=1e-5), (loss, ref)

    # Test 2: multiple pixel tiles per image with a partial last tile
    # (exercises the in-kernel row mask) by forcing a small tile.
    k3, k4 = jax.random.split(k1)
    N, C, H, W = 2, 4, 48, 48                     # hw = 2304 -> rows = 18
    logits = jax.random.normal(k3, (N, C, H, W), dtype=jnp.float32)
    y = jax.random.randint(k4, (N, H, W), 0, C, dtype=jnp.int32)
    y = y.at[:, :5, :].set(IGNORE_INDEX)
    loss = jax.block_until_ready(
        cross_entropy_loss(logits, y, CLASS_WEIGHT, IGNORE_INDEX, tile_rows=8))
    ref = jax.block_until_ready(
        _reference_ce(logits, y, CLASS_WEIGHT, IGNORE_INDEX))
    assert jnp.allclose(loss, ref, rtol=1e-5, atol=1e-5), (loss, ref)

    # Test 3: hw % 128 != 0 -> kernel body + plain-JAX tail path.
    k5, k6 = jax.random.split(k3)
    N, C, H, W = 2, 4, 12, 12                     # hw = 144 -> rows=1, tail=16
    logits = jax.random.normal(k5, (N, C, H, W), dtype=jnp.float32)
    y = jax.random.randint(k6, (N, H, W), 0, C, dtype=jnp.int32)
    y = y.at[:, :1, :].set(IGNORE_INDEX)
    loss = jax.block_until_ready(
        cross_entropy_loss(logits, y, CLASS_WEIGHT, IGNORE_INDEX))
    ref = jax.block_until_ready(
        _reference_ce(logits, y, CLASS_WEIGHT, IGNORE_INDEX))
    assert jnp.allclose(loss, ref, rtol=1e-5, atol=1e-5), (loss, ref)

    print("KERNEL_OK")
</pallas_src>

<mosaic_0001>
module attributes {stable_mosaic.version = 11 : i64} {
  func.func @_ce_kernel(%arg0: i32, %arg1: i32, %arg2: memref<1x4x2x128xf32, #tpu.memory_space<vmem>>, %arg3: memref<1x2x128xi32, #tpu.memory_space<vmem>>, %arg4: memref<1x1x1x1xf32, #tpu.memory_space<vmem>>, %arg5: memref<1x1x1x1xf32, #tpu.memory_space<vmem>>) attributes {dimension_semantics = [#tpu.dimension_semantics<parallel>, #tpu.dimension_semantics<parallel>], iteration_bounds = array<i64: 2, 1>, scalar_prefetch = 0 : i64, scratch_operands = 0 : i64, tpu.core_type = #tpu.core_type<tc>, window_params = [{transform_indices = @transform_0, window_bounds = array<i64: 1, 4, 2, 128>}, {transform_indices = @transform_1, window_bounds = array<i64: 1, 2, 128>}, {transform_indices = @transform_2, window_bounds = array<i64: 1, 1, 1, 1>}, {transform_indices = @transform_3, window_bounds = array<i64: 1, 1, 1, 1>}]} {
    %c0 = arith.constant 0 : index
    %c0_0 = arith.constant 0 : index
    %c0_1 = arith.constant 0 : index
    %0 = vector.load %arg3[%c0, %c0_0, %c0_1] : memref<1x2x128xi32, #tpu.memory_space<vmem>>, vector<1x2x128xi32>
    %1 = vector.shape_cast %0 : vector<1x2x128xi32> to vector<2x128xi32>
    %c0_2 = arith.constant 0 : index
    %c0_3 = arith.constant 0 : index
    %c0_4 = arith.constant 0 : index
    %c0_5 = arith.constant 0 : index
    %2 = vector.load %arg2[%c0_2, %c0_3, %c0_4, %c0_5] : memref<1x4x2x128xf32, #tpu.memory_space<vmem>>, vector<1x1x2x128xf32>
    %3 = vector.shape_cast %2 : vector<1x1x2x128xf32> to vector<2x128xf32>
    %c0_6 = arith.constant 0 : index
    %c1 = arith.constant 1 : index
    %c0_7 = arith.constant 0 : index
    %c0_8 = arith.constant 0 : index
    %4 = vector.load %arg2[%c0_6, %c1, %c0_7, %c0_8] : memref<1x4x2x128xf32, #tpu.memory_space<vmem>>, vector<1x1x2x128xf32>
    %5 = vector.shape_cast %4 : vector<1x1x2x128xf32> to vector<2x128xf32>
    %6 = arith.maximumf %3, %5 : vector<2x128xf32>
    %c0_9 = arith.constant 0 : index
    %c2 = arith.constant 2 : index
    %c0_10 = arith.constant 0 : index
    %c0_11 = arith.constant 0 : index
    %7 = vector.load %arg2[%c0_9, %c2, %c0_10, %c0_11] : memref<1x4x2x128xf32, #tpu.memory_space<vmem>>, vector<1x1x2x128xf32>
    %8 = vector.shape_cast %7 : vector<1x1x2x128xf32> to vector<2x128xf32>
    %9 = arith.maximumf %6, %8 : vector<2x128xf32>
    %c0_12 = arith.constant 0 : index
    %c3 = arith.constant 3 : index
    %c0_13 = arith.constant 0 : index
    %c0_14 = arith.constant 0 : index
    %10 = vector.load %arg2[%c0_12, %c3, %c0_13, %c0_14] : memref<1x4x2x128xf32, #tpu.memory_space<vmem>>, vector<1x1x2x128xf32>
    %11 = vector.shape_cast %10 : vector<1x1x2x128xf32> to vector<2x128xf32>
    %12 = arith.maximumf %9, %11 : vector<2x128xf32>
    %cst = arith.constant 0.000000e+00 : f32
    %13 = vector.broadcast %cst : f32 to vector<2x128xf32>
    %cst_15 = arith.constant 0.000000e+00 : f32
    %14 = vector.broadcast %cst_15 : f32 to vector<2x128xf32>
    %cst_16 = arith.constant 0.000000e+00 : f32
    %15 = vector.broadcast %cst_16 : f32 to vector<2x128xf32>
    %c0_17 = arith.constant 0 : index
    %c0_18 = arith.constant 0 : index
    %c0_19 = arith.constant 0 : index
    %c0_20 = arith.constant 0 : index
    %16 = vector.load %arg2[%c0_17, %c0_18, %c0_19, %c0_20] : memref<1x4x2x128xf32, #tpu.memory_space<vmem>>, vector<1x1x2x128xf32>
    %17 = vector.shape_cast %16 : vector<1x1x2x128xf32> to vector<2x128xf32>
    %18 = arith.subf %17, %12 : vector<2x128xf32>
    %19 = math.exp %18 : vector<2x128xf32>
    %20 = arith.addf %13, %19 : vector<2x128xf32>
    %c0_i32 = arith.constant 0 : i32
    %21 = vector.broadcast %c0_i32 : i32 to vector<2x128xi32>
    %22 = arith.cmpi eq, %1, %21 : vector<2x128xi32>
    %23 = arith.select %22, %17, %14 : vector<2x128xi1>, vector<2x128xf32>
    %cst_21 = arith.constant 5.000000e-01 : f32
    %24 = vector.broadcast %cst_21 : f32 to vector<2x128xf32>
    %25 = arith.select %22, %24, %15 : vector<2x128xi1>, vector<2x128xf32>
    %c0_22 = arith.constant 0 : index
    %c1_23 = arith.constant 1 : index
    %c0_24 = arith.constant 0 : index
    %c0_25 = arith.constant 0 : index
    %26 = vector.load %arg2[%c0_22, %c1_23, %c0_24, %c0_25] : memref<1x4x2x128xf32, #tpu.memory_space<vmem>>, vector<1x1x2x128xf32>
    %27 = vector.shape_cast %26 : vector<1x1x2x128xf32> to vector<2x128xf32>
    %28 = arith.subf %27, %12 : vector<2x128xf32>
    %29 = math.exp %28 : vector<2x128xf32>
    %30 = arith.addf %20, %29 : vector<2x128xf32>
    %c1_i32 = arith.constant 1 : i32
    %31 = vector.broadcast %c1_i32 : i32 to vector<2x128xi32>
    %32 = arith.cmpi eq, %1, %31 : vector<2x128xi32>
    %33 = arith.select %32, %27, %23 : vector<2x128xi1>, vector<2x128xf32>
    %cst_26 = arith.constant 1.000000e+00 : f32
    %34 = vector.broadcast %cst_26 : f32 to vector<2x128xf32>
    %35 = arith.select %32, %34, %25 : vector<2x128xi1>, vector<2x128xf32>
    %c0_27 = arith.constant 0 : index
    %c2_28 = arith.constant 2 : index
    %c0_29 = arith.constant 0 : index
    %c0_30 = arith.constant 0 : index
    %36 = vector.load %arg2[%c0_27, %c2_28, %c0_29, %c0_30] : memref<1x4x2x128xf32, #tpu.memory_space<vmem>>, vector<1x1x2x128xf32>
    %37 = vector.shape_cast %36 : vector<1x1x2x128xf32> to vector<2x128xf32>
    %38 = arith.subf %37, %12 : vector<2x128xf32>
    %39 = math.exp %38 : vector<2x128xf32>
    %40 = arith.addf %30, %39 : vector<2x128xf32>
    %c2_i32 = arith.constant 2 : i32
    %41 = vector.broadcast %c2_i32 : i32 to vector<2x128xi32>
    %42 = arith.cmpi eq, %1, %41 : vector<2x128xi32>
    %43 = arith.select %42, %37, %33 : vector<2x128xi1>, vector<2x128xf32>
    %cst_31 = arith.constant 1.500000e+00 : f32
    %44 = vector.broadcast %cst_31 : f32 to vector<2x128xf32>
    %45 = arith.select %42, %44, %35 : vector<2x128xi1>, vector<2x128xf32>
    %c0_32 = arith.constant 0 : index
    %c3_33 = arith.constant 3 : index
    %c0_34 = arith.constant 0 : index
    %c0_35 = arith.constant 0 : index
    %46 = vector.load %arg2[%c0_32, %c3_33, %c0_34, %c0_35] : memref<1x4x2x128xf32, #tpu.memory_space<vmem>>, vector<1x1x2x128xf32>
    %47 = vector.shape_cast %46 : vector<1x1x2x128xf32> to vector<2x128xf32>
    %48 = arith.subf %47, %12 : vector<2x128xf32>
    %49 = math.exp %48 : vector<2x128xf32>
    %50 = arith.addf %40, %49 : vector<2x128xf32>
    %c3_i32 = arith.constant 3 : i32
    %51 = vector.broadcast %c3_i32 : i32 to vector<2x128xi32>
    %52 = arith.cmpi eq, %1, %51 : vector<2x128xi32>
    %53 = arith.select %52, %47, %43 : vector<2x128xi1>, vector<2x128xf32>
    %cst_36 = arith.constant 2.000000e+00 : f32
    %54 = vector.broadcast %cst_36 : f32 to vector<2x128xf32>
    %55 = arith.select %52, %54, %45 : vector<2x128xi1>, vector<2x128xf32>
    %56 = math.log %50 : vector<2x128xf32>
    %57 = arith.addf %12, %56 : vector<2x128xf32>
    %58 = arith.subf %57, %53 : vector<2x128xf32>
    %59 = arith.mulf %55, %58 : vector<2x128xf32>
    %60 = vector.shape_cast %59 : vector<2x128xf32> to vector<1x2x128xf32>
    %cst_37 = arith.constant dense<0.000000e+00> : vector<1xf32>
    %61 = vector.multi_reduction <add>, %60, %cst_37 [1, 2] : vector<1x2x128xf32> to vector<1xf32>
    %62 = vector.shape_cast %61 : vector<1xf32> to vector<1x1x1xf32>
    %63 = vector.extract %62[0, 0, 0] : f32 from vector<1x1x1xf32>
    %64 = vector.broadcast %63 : f32 to vector<1x1xf32>
    %c0_38 = arith.constant 0 : index
    %c0_39 = arith.constant 0 : index
    %c0_40 = arith.constant 0 : index
    %c0_41 = arith.constant 0 : index
    %65 = vector.load %arg4[%c0_38, %c0_39, %c0_40, %c0_41] : memref<1x1x1x1xf32, #tpu.memory_space<vmem>>, vector<1x1x1x1xf32>
    %66 = vector.shape_cast %65 : vector<1x1x1x1xf32> to vector<1x1xf32>
    %67 = vector.shape_cast %64 : vector<1x1xf32> to vector<1x1x1x1xf32>
    tpu.vector_store %arg4[%c0_38, %c0_39, %c0_40, %c0_41], %67 {strides = array<i32>} : memref<1x1x1x1xf32, #tpu.memory_space<vmem>>, vector<1x1x1x1xf32>,
    %68 = vector.shape_cast %55 : vector<2x128xf32> to vector<1x2x128xf32>
    %cst_42 = arith.constant dense<0.000000e+00> : vector<1xf32>
    %69 = vector.multi_reduction <add>, %68, %cst_42 [1, 2] : vector<1x2x128xf32> to vector<1xf32>
    %70 = vector.shape_cast %69 : vector<1xf32> to vector<1x1x1xf32>
    %71 = vector.extract %70[0, 0, 0] : f32 from vector<1x1x1xf32>
    %72 = vector.broadcast %71 : f32 to vector<1x1xf32>
    %c0_43 = arith.constant 0 : index
    %c0_44 = arith.constant 0 : index
    %c0_45 = arith.constant 0 : index
    %c0_46 = arith.constant 0 : index
    %73 = vector.load %arg5[%c0_43, %c0_44, %c0_45, %c0_46] : memref<1x1x1x1xf32, #tpu.memory_space<vmem>>, vector<1x1x1x1xf32>
    %74 = vector.shape_cast %73 : vector<1x1x1x1xf32> to vector<1x1xf32>
    %75 = vector.shape_cast %72 : vector<1x1xf32> to vector<1x1x1x1xf32>
    tpu.vector_store %arg5[%c0_43, %c0_44, %c0_45, %c0_46], %75 {strides = array<i32>} : memref<1x1x1x1xf32, #tpu.memory_space<vmem>>, vector<1x1x1x1xf32>,
    return
  }
  func.func @transform_0(%arg0: i32, %arg1: i32) -> (i32, i32, i32, i32) {
    %c0_i32 = arith.constant 0 : i32
    %c0_i32_0 = arith.constant 0 : i32
    %c0_i32_1 = arith.constant 0 : i32
    return %arg0, %c0_i32, %arg1, %c0_i32_0 : i32, i32, i32, i32
  }
  func.func @transform_1(%arg0: i32, %arg1: i32) -> (i32, i32, i32) {
    %c0_i32 = arith.constant 0 : i32
    %c0_i32_0 = arith.constant 0 : i32
    return %arg0, %arg1, %c0_i32 : i32, i32, i32
  }
  func.func @transform_2(%arg0: i32, %arg1: i32) -> (i32, i32, i32, i32) {
    %c0_i32 = arith.constant 0 : i32
    %c0_i32_0 = arith.constant 0 : i32
    %c0_i32_1 = arith.constant 0 : i32
    return %arg0, %arg1, %c0_i32, %c0_i32_0 : i32, i32, i32, i32
  }
  func.func @transform_3(%arg0: i32, %arg1: i32) -> (i32, i32, i32, i32) {
    %c0_i32 = arith.constant 0 : i32
    %c0_i32_0 = arith.constant 0 : i32
    %c0_i32_1 = arith.constant 0 : i32
    return %arg0, %arg1, %c0_i32, %c0_i32_0 : i32, i32, i32, i32
  }
}

</mosaic_0001>

<llo_original>
// kernel: tpu_custom_call.1
$region0: #{tpu_custom_call.1}
  #allocation0 [shape = 'u32[]', space=smem, size = 0x4, offset = 0x4, fixed_abs, tag = 'smem constant byte address 0x4 - core index']
  #allocation1 [shape = 'u32[72,128]{1,0:T(1,128)}', space=vmem, size = 0x9000, scoped, tag = 'internal scratch']
  %s0 = inlined_call_operand.hbm [shape: f32[2,4,2,128], index: 0, kind: input, shape index: {}]
  %s1 = inlined_call_operand.hbm [shape: s32[2,2,128], index: 1, kind: input, shape index: {}]
  %s2 = inlined_call_operand.vmem [shape: f32[2,1,1,1], index: 2, kind: output, shape index: {0}]
  %s3 = inlined_call_operand.vmem [shape: f32[2,1,1,1], index: 3, kind: output, shape index: {1}]
  %4 = xla_tuple %s2, %s3
  %s5 = sld [smem:[#allocation0]]
  $region57: #{tpu_custom_call.1} parent=0
    _
  %s7 = ssub.s32 1, %s5
  %s8 = scalar_select 0, %s7, %s5
  $region1: #{tpu_custom_call.1} parent=0
    #allocation2 [shape = 'u8[8192]{0}', space=vmem, size = 0x2000, scoped, tag = 'input window, operand 0']
    #allocation3 [shape = 's32[2]{0}', space=sflag, size = 0x8, scoped, tag = 'scoped memory for tpu_custom_call.1']
    #allocation4 [shape = 'u8[2048]{0}', space=vmem, size = 0x800, scoped, tag = 'input window, operand 1']
    #allocation5 [shape = 's32[2]{0}', space=sflag, size = 0x8, scoped, tag = 'scoped memory for tpu_custom_call.1']
    %9 = vsyncpa [#allocation3], 0
    %s10 = scalar_lea.sflag [#allocation3], 1
    %11 = vsyncpa %s10, 0
    %12 = vsyncpa [#allocation5], 0
    %s13 = scalar_lea.sflag [#allocation5], 1
    %14 = vsyncpa %s13, 0
    loop: start=0, step=1, limit=4
    $region2: #{tpu_custom_call.1} parent=1 // loop_pre_header
      _
    $region3: #{tpu_custom_call.1} parent=1 // loop_header
      %s16 = sphi 0, %s20
      %p17 = scmp.ge.s32.totalorder %s16, 4
      %s23 = sphi 0, %s35
      %s24 = sphi 0, %s31
      %s25 = sphi 0, %s23
      %s26 = sphi 0, %s24
      %s27 = sphi 0, %s25
      %s28 = sphi 0, %s26
      %s40 = sphi 0, %s42
      %s43 = sphi 0, %s40
      %s44 = sphi 0, %s43
      %s60 = sphi 0, %s44
      %s68 = sphi 0, %s70
      %s71 = sphi 0, %s68
      %s72 = sphi 0, %s71
      %s88 = sphi 0, %s72
      %s96 = sphi 0, %s98
      %s99 = sphi 0, %s96
      %s100 = sphi 0, %s99
      %s116 = sphi 0, %s100
      %s124 = sphi 0, %s126
      %s127 = sphi 0, %s124
      %s128 = sphi 0, %s127
      %s144 = sphi 0, %s128
    $region4: #{tpu_custom_call.1} parent=1 // loop_header_branch
      %19 = sbr.rel (%p17) target = $region8
    $region5: #{tpu_custom_call.1} parent=1 // loop_body
      %s21 = ssub.s32 %s16, 1
      %s22 = ssub.s32 %s16, 2
      %s29 = sadd.s32 1, %s24
      %p30 = scmp.ge.s32.totalorder %s29, 1
      %s31 = scalar_select %p30, 0, %s29
      %s32 = sadd.s32 1, %s23
      %s33 = scalar_select %p30, %s32, %s23
      %p34 = scmp.ge.s32.totalorder %s33, 2
      %s35 = scalar_select %p34, 0, %s33
      %s36 = ssub.s32 %s23, %s35
      %s37 = ssub.s32 %s24, %s31
      %s38 = sor.u32 %s36, %s37
      %p39 = scmp.eq.s32.totalorder %s38, 0
      %s41 = sadd.s32 %s40, 1
      %s42 = scalar_select %p39, %s40, %s41
      %p45 = pneg %p39
      %p46 = scmp.eq.s32.totalorder %s16, 1
      %p47 = por %p45, %p46
      %p48 = scmp.ne.s32.totalorder %s40, %s43
      %p49 = scmp.eq.s32.totalorder %s16, 0
      %p50 = por %p48, %p49
      %p51 = scmp.ne.s32.totalorder %s40, %s43
      %p52 = scmp.eq.s32.totalorder %s21, 1
      %p53 = por %p51, %p52
      %p54 = scmp.ne.s32.totalorder %s43, %s44
      %p55 = scmp.eq.s32.totalorder %s21, 0
      %p56 = por %p54, %p55
      %p57 = scmp.ne.s32.totalorder %s43, %s44
      %p58 = scmp.eq.s32.totalorder %s22, 1
      %p59 = por %p57, %p58
      %p61 = scmp.ne.s32.totalorder %s44, %s60
      %p62 = scmp.eq.s32.totalorder %s22, 0
      %p63 = por %p61, %p62
      %s64 = ssub.s32 %s23, %s35
      %s65 = ssub.s32 %s24, %s31
      %s66 = sor.u32 %s64, %s65
      %p67 = scmp.eq.s32.totalorder %s66, 0
      %s69 = sadd.s32 %s68, 1
      %s70 = scalar_select %p67, %s68, %s69
      %p73 = pneg %p67
      %p74 = scmp.eq.s32.totalorder %s16, 1
      %p75 = por %p73, %p74
      %p76 = scmp.ne.s32.totalorder %s68, %s71
      %p77 = scmp.eq.s32.totalorder %s16, 0
      %p78 = por %p76, %p77
      %p79 = scmp.ne.s32.totalorder %s68, %s71
      %p80 = scmp.eq.s32.totalorder %s21, 1
      %p81 = por %p79, %p80
      %p82 = scmp.ne.s32.totalorder %s71, %s72
      %p83 = scmp.eq.s32.totalorder %s21, 0
      %p84 = por %p82, %p83
      %p85 = scmp.ne.s32.totalorder %s71, %s72
      %p86 = scmp.eq.s32.totalorder %s22, 1
      %p87 = por %p85, %p86
      %p89 = scmp.ne.s32.totalorder %s72, %s88
      %p90 = scmp.eq.s32.totalorder %s22, 0
      %p91 = por %p89, %p90
      %s92 = ssub.s32 %s23, %s35
      %s93 = ssub.s32 %s24, %s31
      %s94 = sor.u32 %s92, %s93
      %p95 = scmp.eq.s32.totalorder %s94, 0
      %s97 = sadd.s32 %s96, 1
      %s98 = scalar_select %p95, %s96, %s97
      %p101 = pneg %p95
      %p102 = scmp.eq.s32.totalorder %s16, 1
      %p103 = por %p101, %p102
      %p104 = scmp.ne.s32.totalorder %s96, %s99
      %p105 = scmp.eq.s32.totalorder %s16, 0
      %p106 = por %p104, %p105
      %p107 = scmp.ne.s32.totalorder %s96, %s99
      %p108 = scmp.eq.s32.totalorder %s21, 1
      %p109 = por %p107, %p108
      %p110 = scmp.ne.s32.totalorder %s99, %s100
      %p111 = scmp.eq.s32.totalorder %s21, 0
      %p112 = por %p110, %p111
      %p113 = scmp.ne.s32.totalorder %s99, %s100
      %p114 = scmp.eq.s32.totalorder %s22, 1
      %p115 = por %p113, %p114
      %p117 = scmp.ne.s32.totalorder %s100, %s116
      %p118 = scmp.eq.s32.totalorder %s22, 0
      %p119 = por %p117, %p118
      %s120 = ssub.s32 %s23, %s35
      %s121 = ssub.s32 %s24, %s31
      %s122 = sor.u32 %s120, %s121
      %p123 = scmp.eq.s32.totalorder %s122, 0
      %s125 = sadd.s32 %s124, 1
      %s126 = scalar_select %p123, %s124, %s125
      %p129 = pneg %p123
      %p130 = scmp.eq.s32.totalorder %s16, 1
      %p131 = por %p129, %p130
      %p132 = scmp.ne.s32.totalorder %s124, %s127
      %p133 = scmp.eq.s32.totalorder %s16, 0
      %p134 = por %p132, %p133
      %p135 = scmp.ne.s32.totalorder %s124, %s127
      %p136 = scmp.eq.s32.totalorder %s21, 1
      %p137 = por %p135, %p136
      %p138 = scmp.ne.s32.totalorder %s127, %s128
      %p139 = scmp.eq.s32.totalorder %s21, 0
      %p140 = por %p138, %p139
      %p141 = scmp.ne.s32.totalorder %s127, %s128
      %p142 = scmp.eq.s32.totalorder %s22, 1
      %p143 = por %p141, %p142
      %p145 = scmp.ne.s32.totalorder %s128, %s144
      %p146 = scmp.eq.s32.totalorder %s22, 0
      %p147 = por %p145, %p146
      %p148 = scmp.le.s32.totalorder 1, %s16
      %p149 = scmp.lt.s32.totalorder %s16, 3
      %p150 = pnand %p148, %p149
      %p151 = pneg %p150
      // Predicated region
      $region9: #{tpu_custom_call.1} parent=5 // pred_check
        _
      $region10: #{tpu_custom_call.1} parent=5 // pred_check_branch
        %153 = sbr.rel (%p150) target = $region12
      $region11: #{tpu_custom_call.1} parent=5 // pred_region
        %s154 = ssub.s32 %s16, 1
      $region12: #{tpu_custom_call.1} parent=5 // pred_fallthru
        _
      %p155 = scmp.lt.s32.totalorder %s16, 2
      // Predicated region
      $region13: #{tpu_custom_call.1} parent=5 // pred_check
        %p156 = pneg %p155
      $region14: #{tpu_custom_call.1} parent=5 // pred_check_branch
        %158 = sbr.rel (%p156) target = $region16
      $region15: #{tpu_custom_call.1} parent=5 // pred_region
        // Predicated region
        $region17: #{tpu_custom_call.1} parent=15 // pred_check
          %p159 = pneg %p50
        $region18: #{tpu_custom_call.1} parent=15 // pred_check_branch
          %161 = sbr.rel (%p159) target = $region20
        $region19: #{tpu_custom_call.1} parent=15 // pred_region
          %s162 = sand.u32 %s40, 1
          %s163 = scalar_lea.sflag [#allocation3], %s162
          %s164 = sand.u32 %s40, 1
          %s165 = smul.addr %s164, 8
          %s166 = scalar_lea.vmem [#allocation2], %s165
          %168 = vsyncadd %s163, 0
          %s169 = smul.addr %s23, 4
          %s170 = sadd.s32 %s24, %s169
          %s171 = smul.addr %s170, 2
          %s172 = scalar_lea.hbm %s0, %s171
          %s173 = sshll.u32 %s172, 4
          %s174 = int_to_ptr.hbm [resolvable:$true] %s173
          %s175 = sshll.u32 %s166, 4
          %s176 = int_to_ptr.vmem [resolvable:$true] %s175
          %181 = dma.hbm_to_vmem [thread:$0]  %s174, 128, %s176, %s163, 32, 32, 2
        $region20: #{tpu_custom_call.1} parent=15 // pred_fallthru
          _
        // Predicated region
        $region21: #{tpu_custom_call.1} parent=15 // pred_check
          %p182 = pneg %p78
        $region22: #{tpu_custom_call.1} parent=15 // pred_check_branch
          %184 = sbr.rel (%p182) target = $region24
        $region23: #{tpu_custom_call.1} parent=15 // pred_region
          %s185 = sand.u32 %s68, 1
          %s186 = scalar_lea.sflag [#allocation5], %s185
          %s187 = sand.u32 %s68, 1
          %s188 = smul.addr %s187, 2
          %s189 = scalar_lea.vmem [#allocation4], %s188
          %191 = vsyncadd %s186, 0
          %s192 = sadd.s32 %s24, %s23
          %s193 = smul.addr %s192, 2
          %s194 = scalar_lea.hbm %s1, %s193
          %s196 = sshll.u32 %s194, 4
          %s197 = int_to_ptr.hbm [resolvable:$true] %s196
          %s198 = sshll.u32 %s189, 4
          %s199 = int_to_ptr.vmem [resolvable:$true] %s198
          %201 = dma.hbm_to_vmem [thread:$0]  %s197, 32, %s199, %s186
        $region24: #{tpu_custom_call.1} parent=15 // pred_fallthru
          _
      $region16: #{tpu_custom_call.1} parent=5 // pred_fallthru
        _
      %p202 = scmp.le.s32.totalorder 1, %s16
      %p203 = scmp.lt.s32.totalorder %s16, 3
      %p204 = pnand %p202, %p203
      %p205 = pneg %p204
      // Predicated region
      $region25: #{tpu_custom_call.1} parent=5 // pred_check
        _
      $region26: #{tpu_custom_call.1} parent=5 // pred_check_branch
        %207 = sbr.rel (%p204) target = $region28
      $region27: #{tpu_custom_call.1} parent=5 // pred_region
        %s208 = ssub.s32 %s16, 1
        %s209 = sand.u32 %s43, 1
        %s210 = scalar_lea.sflag [#allocation3], %s209
        %s211 = sand.u32 %s43, 1
        %s212 = smul.addr %s211, 8
        %s213 = scalar_lea.vmem [#allocation2], %s212
        // Predicated region
        $region29: #{tpu_custom_call.1} parent=27 // pred_check
          %p214 = pneg %p56
        $region30: #{tpu_custom_call.1} parent=27 // pred_check_branch
          %216 = sbr.rel (%p214) target = $region32
        $region31: #{tpu_custom_call.1} parent=27 // pred_region
          %218 = dma.done %s210, 128
        $region32: #{tpu_custom_call.1} parent=27 // pred_fallthru
          _
        %s219 = sand.u32 %s71, 1
        %s220 = scalar_lea.sflag [#allocation5], %s219
        %s221 = sand.u32 %s71, 1
        %s222 = smul.addr %s221, 2
        %s223 = scalar_lea.vmem [#allocation4], %s222
        // Predicated region
        $region33: #{tpu_custom_call.1} parent=27 // pred_check
          %p224 = pneg %p84
        $region34: #{tpu_custom_call.1} parent=27 // pred_check_branch
          %226 = sbr.rel (%p224) target = $region36
        $region35: #{tpu_custom_call.1} parent=27 // pred_region
          %228 = dma.done %s220, 32
        $region36: #{tpu_custom_call.1} parent=27 // pred_fallthru
          _
        %s229 = sand.u32 %s43, 1
        %s230 = scalar_lea.sflag [#allocation3], %s229
        %s231 = sand.u32 %s43, 1
        %s232 = smul.addr %s231, 8
        %s233 = scalar_lea.vmem [#allocation2], %s232
        %p234 = pneg %p56
        %p235 = pneg %p53
        %s236 = sand.u32 %s71, 1
        %s237 = scalar_lea.sflag [#allocation5], %s236
        %s238 = sand.u32 %s71, 1
        %s239 = smul.addr %s238, 2
        %s240 = scalar_lea.vmem [#allocation4], %s239
        %p241 = pneg %p84
        %p242 = pneg %p81
        %p243 = pneg %p112
        %p244 = pneg %p109
        %p245 = scmp.lt.s32.totalorder %s25, 1
        %s246 = scalar_select %p245, %s25, 1
        %p247 = scmp.lt.s32.totalorder %s26, 0
        %s248 = scalar_select %p247, %s26, 0
        %s249 = sadd.s32 %s248, %s246
        %s250 = scalar_lea.vmem %s2, %s249
        %p251 = pneg %p140
        %p252 = pneg %p137
        %p253 = scmp.lt.s32.totalorder %s25, 1
        %s254 = scalar_select %p253, %s25, 1
        %p255 = scmp.lt.s32.totalorder %s26, 0
        %s256 = scalar_select %p255, %s26, 0
        %s257 = sadd.s32 %s256, %s254
        %s258 = scalar_lea.vmem %s3, %s257
        %p259 = scmp.lt.s32.totalorder %s25, 1
        %s260 = scalar_select %p259, %s25, 1
        %p261 = scmp.lt.s32.totalorder %s26, 0
        %s262 = scalar_select %p261, %s26, 0
        %s263 = sadd.s32 %s262, %s260
        %s264 = scalar_lea.vmem %s2, %s263
        %p265 = scmp.lt.s32.totalorder %s25, 1
        %s266 = scalar_select %p265, %s25, 1
        %p267 = scmp.lt.s32.totalorder %s26, 0
        %s268 = scalar_select %p267, %s26, 0
        %s269 = sadd.s32 %s268, %s266
        %s270 = scalar_lea.vmem %s3, %s269
        %v271 = vld [vmem:[%s223] sm:$0x3]
        %v272 = vld [vmem:[%s213] sm:$0x3]
        %s273 = scalar_lea.vmem %s213, 2 [#allocation2]
        %v274 = vld [vmem:[%s273] sm:$0x3]
        %v275 = vmax.f32 %v272, %v274
        %s276 = scalar_lea.vmem %s213, 4 [#allocation2]
        %v277 = vld [vmem:[%s276] sm:$0x3]
        %v278 = vmax.f32 %v275, %v277
        %s279 = scalar_lea.vmem %s213, 6 [#allocation2]
        %v280 = vld [vmem:[%s279] sm:$0x3]
        %v281 = vmax.f32 %v278, %v280
        %v282 = vsub.f32 %v272, %v281
        %v283 = vmul.f32 %v282, 1.442695
        %v284 = vpow.pop %v283
        %v285 = vadd.f32 %v284, 0.0
        %vm286 = vcmp.eq.s32.totalorder %v271, 0
        %v287 = vsel %vm286, %v272, 0.0
        %v288 = vsel %vm286, 0.5, 0.0
        %v289 = vsub.f32 %v274, %v281
        %v290 = vmul.f32 %v289, 1.442695
        %v291 = vpow.pop %v290
        %v292 = vadd.f32 %v285, %v291
        %vm293 = vcmp.eq.s32.totalorder %v271, 1
        %v294 = vsel %vm293, %v274, %v287
        %v295 = vsel %vm293, 1.0, %v288
        %v296 = vsub.f32 %v277, %v281
        %v297 = vmul.f32 %v296, 1.442695
        %v298 = vpow.pop %v297
        %v299 = vadd.f32 %v292, %v298
        %vm300 = vcmp.eq.s32.totalorder %v271, 2
        %v301 = vsel %vm300, %v277, %v294
        %v302 = vsel %vm300, 1.5, %v295
        %v303 = vsub.f32 %v280, %v281
        %v304 = vmul.f32 %v303, 1.442695
        %v305 = vpow.pop %v304
        %v306 = vadd.f32 %v299, %v305
        %vm307 = vcmp.eq.s32.totalorder %v271, 3
        %v308 = vsel %vm307, %v280, %v301
        %v309 = vsel %vm307, 2.0, %v302
        %v310 = vlog2.pop %v306
        %v311 = vmul.f32 %v310, 0.6931472
        %v312 = vadd.f32 %v281, %v311
        %v313 = vsub.f32 %v312, %v308
        %v314 = vmul.f32 %v309, %v313
        %vm315 = vcmask 1041408
        %v316 = vsel %vm315, %v314, 0.0
        %317 = vadd.xlane.f32.xlu0 %v316
        %v318 = vpop.xlane.xlu0 %317
        %v319 = vrot.slane %v318, 4
        %v320 = vadd.f32 %v318, %v319
        %v321 = vrot.slane %v320, 2
        %v322 = vadd.f32 %v320, %v321
        %v323 = vrot.slane %v322, 1
        %v324 = vadd.f32 %v322, %v323
        %s325 = vtos %v324
        %v326 = vstv %s325
        %vm327 = vcmask 0
        %328 = vst.msk [vmem:[%s264] sm:$0x1] %vm327, %v326
        %v329 = vsel %vm315, %v309, 0.0
        %330 = vadd.xlane.f32.xlu0 %v329
        %v331 = vpop.xlane.xlu0 %330
        %v332 = vrot.slane %v331, 4
        %v333 = vadd.f32 %v331, %v332
        %v334 = vrot.slane %v333, 2
        %v335 = vadd.f32 %v333, %v334
        %v336 = vrot.slane %v335, 1
        %v337 = vadd.f32 %v335, %v336
        %s338 = vtos %v337
        %v339 = vstv %s338
        %340 = vst.msk [vmem:[%s270] sm:$0x1] %vm327, %v339
        %p341 = scmp.lt.s32.totalorder %s25, 1
        %s342 = scalar_select %p341, %s25, 1
        %p343 = scmp.lt.s32.totalorder %s26, 0
        %s344 = scalar_select %p343, %s26, 0
        %s345 = sadd.s32 %s344, %s342
        %s346 = scalar_lea.vmem %s2, %s345
        %p347 = scmp.lt.s32.totalorder %s25, 1
        %s348 = scalar_select %p347, %s25, 1
        %p349 = scmp.lt.s32.totalorder %s26, 0
        %s350 = scalar_select %p349, %s26, 0
        %s351 = sadd.s32 %s350, %s348
        %s352 = scalar_lea.vmem %s3, %s351
        // Predicated region
        $region37: #{tpu_custom_call.1} parent=27 // pred_check
          %p353 = pneg %p109
        $region38: #{tpu_custom_call.1} parent=27 // pred_check_branch
          %355 = sbr.rel (%p353) target = $region40
        $region39: #{tpu_custom_call.1} parent=27 // pred_region
          _
        $region40: #{tpu_custom_call.1} parent=27 // pred_fallthru
          _
        // Predicated region
        $region41: #{tpu_custom_call.1} parent=27 // pred_check
          %p356 = pneg %p137
        $region42: #{tpu_custom_call.1} parent=27 // pred_check_branch
          %358 = sbr.rel (%p356) target = $region44
        $region43: #{tpu_custom_call.1} parent=27 // pred_region
          _
        $region44: #{tpu_custom_call.1} parent=27 // pred_fallthru
          _
      $region28: #{tpu_custom_call.1} parent=5 // pred_fallthru
        _
      %p359 = scmp.le.s32.totalorder 2, %s16
      // Predicated region
      $region45: #{tpu_custom_call.1} parent=5 // pred_check
        %p360 = pneg %p359
      $region46: #{tpu_custom_call.1} parent=5 // pred_check_branch
        %362 = sbr.rel (%p360) target = $region48
      $region47: #{tpu_custom_call.1} parent=5 // pred_region
        %s363 = ssub.s32 %s16, 2
        // Predicated region
        $region49: #{tpu_custom_call.1} parent=47 // pred_check
          %p364 = pneg %p115
        $region50: #{tpu_custom_call.1} parent=47 // pred_check_branch
          %366 = sbr.rel (%p364) target = $region52
        $region51: #{tpu_custom_call.1} parent=47 // pred_region
          %p367 = scmp.lt.s32.totalorder %s27, 1
          %s368 = scalar_select %p367, %s27, 1
          %p369 = scmp.lt.s32.totalorder %s28, 0
          %s370 = scalar_select %p369, %s28, 0
          %s371 = sadd.s32 %s370, %s368
          %s372 = scalar_lea.vmem %s2, %s371
        $region52: #{tpu_custom_call.1} parent=47 // pred_fallthru
          _
        // Predicated region
        $region53: #{tpu_custom_call.1} parent=47 // pred_check
          %p373 = pneg %p143
        $region54: #{tpu_custom_call.1} parent=47 // pred_check_branch
          %375 = sbr.rel (%p373) target = $region56
        $region55: #{tpu_custom_call.1} parent=47 // pred_region
          %p376 = scmp.lt.s32.totalorder %s27, 1
          %s377 = scalar_select %p376, %s27, 1
          %p378 = scmp.lt.s32.totalorder %s28, 0
          %s379 = scalar_select %p378, %s28, 0
          %s380 = sadd.s32 %s379, %s377
          %s381 = scalar_lea.vmem %s3, %s380
        $region56: #{tpu_custom_call.1} parent=47 // pred_fallthru
          _
      $region48: #{tpu_custom_call.1} parent=5 // pred_fallthru
        _
    $region6: #{tpu_custom_call.1} parent=1 // loop_footer
      %s20 = sadd.s32 1, %s16
    $region7: #{tpu_custom_call.1} parent=1 // loop_footer_branch
      %15 = sbr.rel target = $region3
    $region8: #{tpu_custom_call.1} parent=1 // loop_exit
      _
    %382 = vsyncpa [#allocation3], 1
    %s383 = scalar_lea.sflag [#allocation3], 1
    %384 = vsyncpa %s383, 1
    %385 = vsyncpa [#allocation5], 1
    %s386 = scalar_lea.sflag [#allocation5], 1
    %387 = vsyncpa %s386, 1

</llo_original>
